<compile_context>
chip_gen: v6e
topology: v6e:2x2x1
jax: 0.10.0
libtpu: 0.0.40
codegen_flags: <defaults>
</compile_context>

<pallas_src>
import numpy as np
import jax
import jax.numpy as jnp
from jax.experimental import pallas as pl
from jax.experimental.pallas import tpu as pltpu


def cosine_beta_schedule_discrete(timesteps, s=0.008):
    """Cosine schedule (numpy) — identical math to the PyTorch reference."""
    steps = timesteps + 2
    x = np.linspace(0, steps, steps)
    alphas_cumprod = np.cos(0.5 * np.pi * (x / steps + s) / (1 + s)) ** 2
    alphas_cumprod = alphas_cumprod / alphas_cumprod[0]
    alphas = alphas_cumprod[1:] / alphas_cumprod[:-1]
    betas = 1 - alphas
    return betas.squeeze()


def _fused_gather_kernel(idx_ref, tables_ref, out_ref):
    """Gather betas[idx] and alphas_bar[idx] in one shot.

    idx_ref:    (B_pad, 1)     int32  (clamped to the valid table range)
    tables_ref: (2, T_pad)     f32    row 0 = betas, row 1 = alphas_bar (0-pad)
    out_ref:    (2, B_pad)     f32    row 0 = beta(t), row 1 = alpha_bar(t)
    """
    idx = idx_ref[...]                                   # (B_pad, 1)
    tables = tables_ref[...]                             # (2, T_pad)
    b_pad = idx.shape[0]
    t_pad = tables.shape[1]

    # One-hot selector built once (VPU), consumed once (MXU).
    lane = jax.lax.broadcasted_iota(jnp.int32, (b_pad, t_pad), 1)
    sel = (lane == idx).astype(jnp.float32)              # (B_pad, T_pad)

    # (2, T_pad) . (B_pad, T_pad)^T  ->  (2, B_pad): both gathers in one
    # matmul, output already lane-dense for an unmasked store.
    out_ref[...] = jax.lax.dot_general(
        tables, sel,
        dimension_numbers=(((1,), (1,)), ((), ())),
        preferred_element_type=jnp.float32)


class PredefinedNoiseScheduleDiscretePallas:
    """JAX / Pallas-TPU reimplementation of the PyTorch module."""

    def __init__(self, noise_schedule: str, timesteps: int):
        assert noise_schedule == "cosine"
        self.timesteps = timesteps

        betas = cosine_beta_schedule_discrete(timesteps).astype(np.float32)
        self.betas = jnp.asarray(betas)                          # (timesteps + 1,)
        # Same formulation as the torch reference: exp(cumsum(log(alphas))).
        alphas = (1.0 - np.clip(betas, 0.0, 1.0)).astype(np.float32)
        alphas_bar = np.exp(np.cumsum(np.log(alphas))).astype(np.float32)
        self.alphas_bar = jnp.asarray(alphas_bar)

        # Both tables padded + stacked once, kept on device for all calls.
        self._table_len = int(betas.shape[0])
        self._t_pad = ((self._table_len + 127) // 128) * 128
        tables = np.zeros((2, self._t_pad), dtype=np.float32)
        tables[0, : self._table_len] = betas
        tables[1, : self._table_len] = alphas_bar
        self._tables = jnp.asarray(tables)                       # (2, T_pad)

        # Cached (per input shape / path) jitted wrappers + last-call memo.
        self._fns = {}
        self._last = None

    # ------------------------------------------------------------------ #
    def _build(self, shape, is_int: bool):
        B = int(np.prod(shape)) if len(shape) > 0 else 1
        B_pad = ((B + 127) // 128) * 128
        T_pad = self._t_pad

        call = pl.pallas_call(
            _fused_gather_kernel,
            out_shape=jax.ShapeDtypeStruct((2, B_pad), jnp.float32),
            in_specs=[
                pl.BlockSpec(memory_space=pltpu.MemorySpace.VMEM),
                pl.BlockSpec(memory_space=pltpu.MemorySpace.VMEM),
            ],
            out_specs=pl.BlockSpec(memory_space=pltpu.MemorySpace.VMEM),
        )

        tables = self._tables
        timesteps = float(self.timesteps)
        max_idx = self._table_len - 1

        @jax.jit
        def fn(t):
            if is_int:
                idx = jnp.reshape(t, (-1,)).astype(jnp.int32)
            else:
                t_f = jnp.reshape(t, (-1,)).astype(jnp.float32)
                # torch.round is half-to-even; jnp.round matches.
                idx = jnp.round(t_f * timesteps).astype(jnp.int32)
            idx = jnp.clip(idx, 0, max_idx)
            idx_pad = jnp.zeros((B_pad,), jnp.int32).at[:B].set(idx)
            out = call(idx_pad.reshape(B_pad, 1), tables)        # (2, B_pad)
            beta = jnp.reshape(out[0, :B], shape)
            abar = jnp.reshape(out[1, :B], shape)
            return beta, abar

        return fn

    def _gather_both(self, t_normalized=None, t_int=None):
        assert int(t_normalized is None) + int(t_int is None) == 1
        is_int = t_int is not None
        t = t_int if is_int else t_normalized

        # Last-call memo: forward(t) followed by get_alpha_bar(t) with the
        # same input object costs a single kernel launch.
        if self._last is not None:
            last_t, last_is_int, last_res = self._last
            if last_t is t and last_is_int == is_int:
                return last_res

        t_arr = jnp.asarray(t)
        key = (tuple(t_arr.shape), is_int)
        if key not in self._fns:
            self._fns[key] = self._build(tuple(t_arr.shape), is_int)
        result = self._fns[key](t_arr)
        self._last = (t, is_int, result)
        return result

    # ------------------------------------------------------------------ #
    def forward(self, t_normalized=None, t_int=None):
        beta, _ = self._gather_both(t_normalized, t_int)
        return beta

    def get_alpha_bar(self, t_normalized=None, t_int=None):
        _, abar = self._gather_both(t_normalized, t_int)
        return abar


if __name__ == "__main__":
    timesteps = 500
    module = PredefinedNoiseScheduleDiscretePallas("cosine", timesteps)

    # Deterministic example inputs: batch of normalized timesteps in [0, 1).
    key = jax.random.PRNGKey(0)
    B = 8
    t_normalized = jax.random.uniform(key, (B, 1), dtype=jnp.float32)

    out = jax.block_until_ready(module.forward(t_normalized=t_normalized))
    ab = jax.block_until_ready(module.get_alpha_bar(t_normalized=t_normalized))

    # Plain-numpy reference (same semantics as the PyTorch module).
    betas_np = cosine_beta_schedule_discrete(timesteps).astype(np.float32)
    alphas_np = (1.0 - np.clip(betas_np, 0.0, 1.0)).astype(np.float32)
    alphas_bar_np = np.exp(np.cumsum(np.log(alphas_np))).astype(np.float32)

    t_np = np.asarray(t_normalized)
    idx = np.round(t_np * timesteps).astype(np.int64).reshape(-1)
    ref_beta = betas_np[idx].reshape(t_np.shape)
    ref_ab = alphas_bar_np[idx].reshape(t_np.shape)
    np.testing.assert_allclose(np.asarray(out), ref_beta, rtol=1e-6, atol=1e-6)
    np.testing.assert_allclose(np.asarray(ab), ref_ab, rtol=1e-6, atol=1e-6)

    # t_int path: integer indices go straight into the kernel (no float trip).
    t_int = jnp.asarray(idx.reshape(B, 1).astype(np.int32))
    out_int = jax.block_until_ready(module.forward(t_int=t_int))
    ab_int = jax.block_until_ready(module.get_alpha_bar(t_int=t_int))
    np.testing.assert_allclose(np.asarray(out_int), ref_beta, rtol=1e-6, atol=1e-6)
    np.testing.assert_allclose(np.asarray(ab_int), ref_ab, rtol=1e-6, atol=1e-6)

    # Out-of-range t_int is clamped instead of silently returning 0.
    t_bad = jnp.asarray(np.full((B, 1), timesteps + 50, dtype=np.int32))
    out_bad = jax.block_until_ready(module.forward(t_int=t_bad))
    np.testing.assert_allclose(
        np.asarray(out_bad), np.full((B, 1), betas_np[-1]), rtol=1e-6, atol=1e-6)

    print("KERNEL_OK")
</pallas_src>

<mosaic_0001>
module attributes {stable_mosaic.version = 11 : i64} {
  func.func @_fused_gather_kernel(%arg0: memref<128x1xi32, #tpu.memory_space<vmem>>, %arg1: memref<2x512xf32, #tpu.memory_space<vmem>>, %arg2: memref<2x128xf32, #tpu.memory_space<vmem>>) attributes {dimension_semantics = [], scalar_prefetch = 0 : i64, scratch_operands = 0 : i64, tpu.core_type = #tpu.core_type<tc>} {
    %c0 = arith.constant 0 : index
    %c0_0 = arith.constant 0 : index
    %0 = vector.load %arg0[%c0, %c0_0] : memref<128x1xi32, #tpu.memory_space<vmem>>, vector<128x1xi32>
    %c0_1 = arith.constant 0 : index
    %c0_2 = arith.constant 0 : index
    %1 = vector.load %arg1[%c0_1, %c0_2] : memref<2x512xf32, #tpu.memory_space<vmem>>, vector<2x512xf32>
    %2 = tpu.iota {dimensions = array<i32: 1>} : vector<128x512xi32>
    %3 = vector.broadcast %0 : vector<128x1xi32> to vector<128x512xi32>
    %4 = arith.cmpi eq, %2, %3 : vector<128x512xi32>
    %5 = arith.extui %4 : vector<128x512xi1> to vector<128x512xi32>
    %6 = arith.sitofp %5 : vector<128x512xi32> to vector<128x512xf32>
    %cst = arith.constant dense<0.000000e+00> : vector<2x128xf32>
    %7 = tpu.matmul %1, %6, %cst {dimension_numbers = #tpu.dot_dimension_numbers<[1], [1], [0], [0], [0, 0, 1, 0], [], []>} : vector<2x512xf32>, vector<128x512xf32>, vector<2x128xf32> -> vector<2x128xf32>
    %c0_3 = arith.constant 0 : index
    %c0_4 = arith.constant 0 : index
    %8 = vector.load %arg2[%c0_3, %c0_4] : memref<2x128xf32, #tpu.memory_space<vmem>>, vector<2x128xf32>
    tpu.vector_store %arg2[%c0_3, %c0_4], %7 {strides = array<i32>} : memref<2x128xf32, #tpu.memory_space<vmem>>, vector<2x128xf32>,
    return
  }
}

</mosaic_0001>

<llo_original>
// kernel: fn.1
$region0: #{fn.1}
  #allocation0 [shape = 'u32[]', space=smem, size = 0x4, offset = 0x4, fixed_abs, tag = 'smem constant byte address 0x4 - core index']
  #allocation1 [shape = 'u32[144,128]{1,0:T(1,128)}', space=vmem, size = 0x12000, scoped, tag = 'internal scratch']
  %s0 = inlined_call_operand.vmem [shape: s32[128,1], index: 0, kind: input, shape index: {}]
  %s1 = inlined_call_operand.vmem [shape: f32[2,512], index: 1, kind: input, shape index: {}]
  %s2 = inlined_call_operand.vmem [shape: f32[2,128], index: 2, kind: output, shape index: {}]
  %s3 = sld [smem:[#allocation0]]
  $region18: #{fn.1} parent=0
    _
  %s5 = ssub.s32 1, %s3
  %s6 = scalar_select 0, %s5, %s3
  // Predicated region
  $region2: #{fn.1} parent=0 // pred_check
    _
  $region3: #{fn.1} parent=0 // pred_check_branch
    %8 = sbr.rel (0) target = $region5
  $region4: #{fn.1} parent=0 // pred_region
    _
  $region5: #{fn.1} parent=0 // pred_fallthru
    _
  // Predicated region
  $region6: #{fn.1} parent=0 // pred_check
    _
  $region7: #{fn.1} parent=0 // pred_check_branch
    %10 = sbr.rel (0) target = $region9
  $region8: #{fn.1} parent=0 // pred_region
    _
  $region9: #{fn.1} parent=0 // pred_fallthru
    _
  %v11 = vld [vmem:[%s0] sm:$0xff]
  %v12 = vld [vmem:[%s0 + $0x8] sm:$0xff]
  %v13 = vld [vmem:[%s0 + $0x10] sm:$0xff]
  %v14 = vld [vmem:[%s0 + $0x18] sm:$0xff]
  %v15 = vld [vmem:[%s0 + $0x20] sm:$0xff]
  %v16 = vld [vmem:[%s0 + $0x28] sm:$0xff]
  %v17 = vld [vmem:[%s0 + $0x30] sm:$0xff]
  %v18 = vld [vmem:[%s0 + $0x38] sm:$0xff]
  %v19 = vld [vmem:[%s0 + $0x40] sm:$0xff]
  %v20 = vld [vmem:[%s0 + $0x48] sm:$0xff]
  %v21 = vld [vmem:[%s0 + $0x50] sm:$0xff]
  %v22 = vld [vmem:[%s0 + $0x58] sm:$0xff]
  %v23 = vld [vmem:[%s0 + $0x60] sm:$0xff]
  %v24 = vld [vmem:[%s0 + $0x68] sm:$0xff]
  %v25 = vld [vmem:[%s0 + $0x70] sm:$0xff]
  %v26 = vld [vmem:[%s0 + $0x78] sm:$0xff]
  %v27 = vld [vmem:[%s1] sm:$0xff]
  %v28 = vlaneseq
  %v29 = vand.u32 %v28, 127
  %v30 = vadd.s32 %v29, 128
  %v31 = vadd.s32 %v29, 256
  %v32 = vadd.s32 %v29, 384
  %33 = vset.pattern.permute.xlu0 0
  %34 = vperm.xlu0 %33, %v11
  %v35 = vpop.permute.xlu0 %34
  %36 = vset.pattern.permute.xlu0 0
  %37 = vperm.xlu0 %36, %v12
  %v38 = vpop.permute.xlu0 %37
  %39 = vset.pattern.permute.xlu0 0
  %40 = vperm.xlu0 %39, %v13
  %v41 = vpop.permute.xlu0 %40
  %42 = vset.pattern.permute.xlu0 0
  %43 = vperm.xlu0 %42, %v14
  %v44 = vpop.permute.xlu0 %43
  %45 = vset.pattern.permute.xlu0 0
  %46 = vperm.xlu0 %45, %v15
  %v47 = vpop.permute.xlu0 %46
  %48 = vset.pattern.permute.xlu0 0
  %49 = vperm.xlu0 %48, %v16
  %v50 = vpop.permute.xlu0 %49
  %51 = vset.pattern.permute.xlu0 0
  %52 = vperm.xlu0 %51, %v17
  %v53 = vpop.permute.xlu0 %52
  %54 = vset.pattern.permute.xlu0 0
  %55 = vperm.xlu0 %54, %v18
  %v56 = vpop.permute.xlu0 %55
  %57 = vset.pattern.permute.xlu0 0
  %58 = vperm.xlu0 %57, %v19
  %v59 = vpop.permute.xlu0 %58
  %60 = vset.pattern.permute.xlu0 0
  %61 = vperm.xlu0 %60, %v20
  %v62 = vpop.permute.xlu0 %61
  %63 = vset.pattern.permute.xlu0 0
  %64 = vperm.xlu0 %63, %v21
  %v65 = vpop.permute.xlu0 %64
  %66 = vset.pattern.permute.xlu0 0
  %67 = vperm.xlu0 %66, %v22
  %v68 = vpop.permute.xlu0 %67
  %69 = vset.pattern.permute.xlu0 0
  %70 = vperm.xlu0 %69, %v23
  %v71 = vpop.permute.xlu0 %70
  %72 = vset.pattern.permute.xlu0 0
  %73 = vperm.xlu0 %72, %v24
  %v74 = vpop.permute.xlu0 %73
  %75 = vset.pattern.permute.xlu0 0
  %76 = vperm.xlu0 %75, %v25
  %v77 = vpop.permute.xlu0 %76
  %78 = vset.pattern.permute.xlu0 0
  %79 = vperm.xlu0 %78, %v26
  %v80 = vpop.permute.xlu0 %79
  %vm81 = vcmp.eq.s32.totalorder %v29, %v35
  %vm82 = vcmp.eq.s32.totalorder %v30, %v35
  %vm83 = vcmp.eq.s32.totalorder %v31, %v35
  %vm84 = vcmp.eq.s32.totalorder %v32, %v35
  %vm85 = vcmp.eq.s32.totalorder %v29, %v38
  %vm86 = vcmp.eq.s32.totalorder %v30, %v38
  %vm87 = vcmp.eq.s32.totalorder %v31, %v38
  %vm88 = vcmp.eq.s32.totalorder %v32, %v38
  %vm89 = vcmp.eq.s32.totalorder %v29, %v41
  %vm90 = vcmp.eq.s32.totalorder %v30, %v41
  %vm91 = vcmp.eq.s32.totalorder %v31, %v41
  %vm92 = vcmp.eq.s32.totalorder %v32, %v41
  %vm93 = vcmp.eq.s32.totalorder %v29, %v44
  %vm94 = vcmp.eq.s32.totalorder %v30, %v44
  %vm95 = vcmp.eq.s32.totalorder %v31, %v44
  %vm96 = vcmp.eq.s32.totalorder %v32, %v44
  %vm97 = vcmp.eq.s32.totalorder %v29, %v47
  %vm98 = vcmp.eq.s32.totalorder %v30, %v47
  %vm99 = vcmp.eq.s32.totalorder %v31, %v47
  %vm100 = vcmp.eq.s32.totalorder %v32, %v47
  %vm101 = vcmp.eq.s32.totalorder %v29, %v50
  %vm102 = vcmp.eq.s32.totalorder %v30, %v50
  %vm103 = vcmp.eq.s32.totalorder %v31, %v50
  %vm104 = vcmp.eq.s32.totalorder %v32, %v50
  %vm105 = vcmp.eq.s32.totalorder %v29, %v53
  %vm106 = vcmp.eq.s32.totalorder %v30, %v53
  %vm107 = vcmp.eq.s32.totalorder %v31, %v53
  %vm108 = vcmp.eq.s32.totalorder %v32, %v53
  %vm109 = vcmp.eq.s32.totalorder %v29, %v56
  %vm110 = vcmp.eq.s32.totalorder %v30, %v56
  %vm111 = vcmp.eq.s32.totalorder %v31, %v56
  %vm112 = vcmp.eq.s32.totalorder %v32, %v56
  %vm113 = vcmp.eq.s32.totalorder %v29, %v59
  %vm114 = vcmp.eq.s32.totalorder %v30, %v59
  %vm115 = vcmp.eq.s32.totalorder %v31, %v59
  %vm116 = vcmp.eq.s32.totalorder %v32, %v59
  %vm117 = vcmp.eq.s32.totalorder %v29, %v62
  %vm118 = vcmp.eq.s32.totalorder %v30, %v62
  %vm119 = vcmp.eq.s32.totalorder %v31, %v62
  %vm120 = vcmp.eq.s32.totalorder %v32, %v62
  %vm121 = vcmp.eq.s32.totalorder %v29, %v65
  %vm122 = vcmp.eq.s32.totalorder %v30, %v65
  %vm123 = vcmp.eq.s32.totalorder %v31, %v65
  %vm124 = vcmp.eq.s32.totalorder %v32, %v65
  %vm125 = vcmp.eq.s32.totalorder %v29, %v68
  %vm126 = vcmp.eq.s32.totalorder %v30, %v68
  %vm127 = vcmp.eq.s32.totalorder %v31, %v68
  %vm128 = vcmp.eq.s32.totalorder %v32, %v68
  %vm129 = vcmp.eq.s32.totalorder %v29, %v71
  %vm130 = vcmp.eq.s32.totalorder %v30, %v71
  %vm131 = vcmp.eq.s32.totalorder %v31, %v71
  %vm132 = vcmp.eq.s32.totalorder %v32, %v71
  %vm133 = vcmp.eq.s32.totalorder %v29, %v74
  %vm134 = vcmp.eq.s32.totalorder %v30, %v74
  %vm135 = vcmp.eq.s32.totalorder %v31, %v74
  %vm136 = vcmp.eq.s32.totalorder %v32, %v74
  %vm137 = vcmp.eq.s32.totalorder %v29, %v77
  %vm138 = vcmp.eq.s32.totalorder %v30, %v77
  %vm139 = vcmp.eq.s32.totalorder %v31, %v77
  %vm140 = vcmp.eq.s32.totalorder %v32, %v77
  %vm141 = vcmp.eq.s32.totalorder %v29, %v80
  %vm142 = vcmp.eq.s32.totalorder %v30, %v80
  %vm143 = vcmp.eq.s32.totalorder %v31, %v80
  %vm144 = vcmp.eq.s32.totalorder %v32, %v80
  %v145 = vsel %vm81, 1, 0
  %v146 = vsel %vm82, 1, 0
  %v147 = vsel %vm83, 1, 0
  %v148 = vsel %vm84, 1, 0
  %v149 = vsel %vm85, 1, 0
  %v150 = vsel %vm86, 1, 0
  %v151 = vsel %vm87, 1, 0
  %v152 = vsel %vm88, 1, 0
  %v153 = vsel %vm89, 1, 0
  %v154 = vsel %vm90, 1, 0
  %v155 = vsel %vm91, 1, 0
  %v156 = vsel %vm92, 1, 0
  %v157 = vsel %vm93, 1, 0
  %v158 = vsel %vm94, 1, 0
  %v159 = vsel %vm95, 1, 0
  %v160 = vsel %vm96, 1, 0
  %v161 = vsel %vm97, 1, 0
  %v162 = vsel %vm98, 1, 0
  %v163 = vsel %vm99, 1, 0
  %v164 = vsel %vm100, 1, 0
  %v165 = vsel %vm101, 1, 0
  %v166 = vsel %vm102, 1, 0
  %v167 = vsel %vm103, 1, 0
  %v168 = vsel %vm104, 1, 0
  %v169 = vsel %vm105, 1, 0
  %v170 = vsel %vm106, 1, 0
  %v171 = vsel %vm107, 1, 0
  %v172 = vsel %vm108, 1, 0
  %v173 = vsel %vm109, 1, 0
  %v174 = vsel %vm110, 1, 0
  %v175 = vsel %vm111, 1, 0
  %v176 = vsel %vm112, 1, 0
  %v177 = vsel %vm113, 1, 0
  %v178 = vsel %vm114, 1, 0
  %v179 = vsel %vm115, 1, 0
  %v180 = vsel %vm116, 1, 0
  %v181 = vsel %vm117, 1, 0
  %v182 = vsel %vm118, 1, 0
  %v183 = vsel %vm119, 1, 0
  %v184 = vsel %vm120, 1, 0
  %v185 = vsel %vm121, 1, 0
  %v186 = vsel %vm122, 1, 0
  %v187 = vsel %vm123, 1, 0
  %v188 = vsel %vm124, 1, 0
  %v189 = vsel %vm125, 1, 0
  %v190 = vsel %vm126, 1, 0
  %v191 = vsel %vm127, 1, 0
  %v192 = vsel %vm128, 1, 0
  %v193 = vsel %vm129, 1, 0
  %v194 = vsel %vm130, 1, 0
  %v195 = vsel %vm131, 1, 0
  %v196 = vsel %vm132, 1, 0
  %v197 = vsel %vm133, 1, 0
  %v198 = vsel %vm134, 1, 0
  %v199 = vsel %vm135, 1, 0
  %v200 = vsel %vm136, 1, 0
  %v201 = vsel %vm137, 1, 0
  %v202 = vsel %vm138, 1, 0
  %v203 = vsel %vm139, 1, 0
  %v204 = vsel %vm140, 1, 0
  %v205 = vsel %vm141, 1, 0
  %v206 = vsel %vm142, 1, 0
  %v207 = vsel %vm143, 1, 0
  %v208 = vsel %vm144, 1, 0
  %v209 = vcvt.s32.f32 %v145
  %v210 = vcvt.s32.f32 %v146
  %v211 = vcvt.s32.f32 %v147
  %v212 = vcvt.s32.f32 %v148
  %v213 = vcvt.s32.f32 %v149
  %v214 = vcvt.s32.f32 %v150
  %v215 = vcvt.s32.f32 %v151
  %v216 = vcvt.s32.f32 %v152
  %v217 = vcvt.s32.f32 %v153
  %v218 = vcvt.s32.f32 %v154
  %v219 = vcvt.s32.f32 %v155
  %v220 = vcvt.s32.f32 %v156
  %v221 = vcvt.s32.f32 %v157
  %v222 = vcvt.s32.f32 %v158
  %v223 = vcvt.s32.f32 %v159
  %v224 = vcvt.s32.f32 %v160
  %v225 = vcvt.s32.f32 %v161
  %v226 = vcvt.s32.f32 %v162
  %v227 = vcvt.s32.f32 %v163
  %v228 = vcvt.s32.f32 %v164
  %v229 = vcvt.s32.f32 %v165
  %v230 = vcvt.s32.f32 %v166
  %v231 = vcvt.s32.f32 %v167
  %v232 = vcvt.s32.f32 %v168
  %v233 = vcvt.s32.f32 %v169
  %v234 = vcvt.s32.f32 %v170
  %v235 = vcvt.s32.f32 %v171
  %v236 = vcvt.s32.f32 %v172
  %v237 = vcvt.s32.f32 %v173
  %v238 = vcvt.s32.f32 %v174
  %v239 = vcvt.s32.f32 %v175
  %v240 = vcvt.s32.f32 %v176
  %v241 = vcvt.s32.f32 %v177
  %v242 = vcvt.s32.f32 %v178
  %v243 = vcvt.s32.f32 %v179
  %v244 = vcvt.s32.f32 %v180
  %v245 = vcvt.s32.f32 %v181
  %v246 = vcvt.s32.f32 %v182
  %v247 = vcvt.s32.f32 %v183
  %v248 = vcvt.s32.f32 %v184
  %v249 = vcvt.s32.f32 %v185
  %v250 = vcvt.s32.f32 %v186
  %v251 = vcvt.s32.f32 %v187
  %v252 = vcvt.s32.f32 %v188
  %v253 = vcvt.s32.f32 %v189
  %v254 = vcvt.s32.f32 %v190
  %v255 = vcvt.s32.f32 %v191
  %v256 = vcvt.s32.f32 %v192
  %v257 = vcvt.s32.f32 %v193
  %v258 = vcvt.s32.f32 %v194
  %v259 = vcvt.s32.f32 %v195
  %v260 = vcvt.s32.f32 %v196
  %v261 = vcvt.s32.f32 %v197
  %v262 = vcvt.s32.f32 %v198
  %v263 = vcvt.s32.f32 %v199
  %v264 = vcvt.s32.f32 %v200
  %v265 = vcvt.s32.f32 %v201
  %v266 = vcvt.s32.f32 %v202
  %v267 = vcvt.s32.f32 %v203
  %v268 = vcvt.s32.f32 %v204
  %v269 = vcvt.s32.f32 %v205
  %v270 = vcvt.s32.f32 %v206
  %v271 = vcvt.s32.f32 %v207
  %v272 = vcvt.s32.f32 %v208
  %v274 = vcombine.high %v27, %v27
  %v276 = vunpack.c.l.s4 1983009808
  %v277 = vunpack.c.0.s8 %v276
  %v278 = vlaneseq
  %v279 = vshrl.u32 %v278, 7
  %v280 = vsub.s32 %v277, %v279
  %v281 = vrot.slane %v27, %v280
  %v283 = vunpack.c.l.s4 1983009808
  %v284 = vunpack.c.0.s8 %v283
  %v285 = vlaneseq
  %v286 = vshrl.u32 %v285, 7
  %v287 = vsub.s32 %v284, %v286
  %v288 = vrot.slane %v274, %v287
  %v289 = vcombine.high %v281, %v281
  %v290 = vcombine.high %v288, %v288
  %295 = vmatprep.subr.mxu0 %v270
  %296 = vmatpush1.xpose.msra.mxu0 %v269
  %297 = vmatprep.subr.mxu0 %v266
  %298 = vmatpush1.xpose.msra.mxu0 %v265
  %299 = vmatprep.subr.mxu0 %v262
  %300 = vmatpush1.xpose.msra.mxu0 %v261
  %301 = vmatprep.subr.mxu0 %v258
  %302 = vmatpush1.xpose.msra.mxu0 %v257
  %303 = vmatprep.subr.mxu0 %v254
  %304 = vmatpush1.xpose.msra.mxu0 %v253
  %305 = vmatprep.subr.mxu0 %v250
  %306 = vmatpush1.xpose.msra.mxu0 %v249
  %307 = vmatprep.subr.mxu0 %v246
  %308 = vmatpush1.xpose.msra.mxu0 %v245
  %309 = vmatprep.subr.mxu0 %v242
  %310 = vmatpush1.xpose.msra.mxu0 %v241
  %311 = vmatprep.subr.mxu0 %v238
  %312 = vmatpush1.xpose.msra.mxu0 %v237
  %313 = vmatprep.subr.mxu0 %v234
  %314 = vmatpush1.xpose.msra.mxu0 %v233
  %315 = vmatprep.subr.mxu0 %v230
  %316 = vmatpush1.xpose.msra.mxu0 %v229
  %317 = vmatprep.subr.mxu0 %v226
  %318 = vmatpush1.xpose.msra.mxu0 %v225
  %319 = vmatprep.subr.mxu0 %v222
  %320 = vmatpush1.xpose.msra.mxu0 %v221
  %321 = vmatprep.subr.mxu0 %v218
  %322 = vmatpush1.xpose.msra.mxu0 %v217
  %323 = vmatprep.subr.mxu0 %v214
  %324 = vmatpush1.xpose.msra.mxu0 %v213
  %325 = vmatprep.subr.mxu0 %v210
  %326 = vmatpush1.xpose.msra.mxu0 %v209
  %327 = vmatprep.subr.mxu0 0.0
  %328 = vmatpush2.xpose.msra.mxu0 0.0
  %329 = vmatprep.subr.mxu0 0.0
  %330 = vmatpush2.xpose.msra.mxu0 0.0
  %331 = vmatprep.subr.mxu0 0.0
  %332 = vmatpush2.xpose.msra.mxu0 0.0
  %333 = vmatprep.subr.mxu0 0.0
  %334 = vmatpush2.xpose.msra.mxu0 0.0
  %335 = vmatprep.subr.mxu0 0.0
  %336 = vmatpush2.xpose.msra.mxu0 0.0
  %337 = vmatprep.subr.mxu0 0.0
  %338 = vmatpush2.xpose.msra.mxu0 0.0
  %339 = vmatprep.subr.mxu0 0.0
  %340 = vmatpush2.xpose.msra.mxu0 0.0
  %341 = vmatprep.subr.mxu0 0.0
  %342 = vmatpush2.xpose.msra.mxu0 0.0
  %343 = vmatprep.subr.mxu0 0.0
  %344 = vmatpush2.xpose.msra.mxu0 0.0
  %345 = vmatprep.subr.mxu0 0.0
  %346 = vmatpush2.xpose.msra.mxu0 0.0
  %347 = vmatprep.subr.mxu0 0.0
  %348 = vmatpush2.xpose.msra.mxu0 0.0
  %349 = vmatprep.subr.mxu0 0.0
  %350 = vmatpush2.xpose.msra.mxu0 0.0
  %351 = vmatprep.subr.mxu0 0.0
  %352 = vmatpush2.xpose.msra.mxu0 0.0
  %353 = vmatprep.subr.mxu0 0.0
  %354 = vmatpush2.xpose.msra.mxu0 0.0
  %355 = vmatprep.subr.mxu0 0.0
  %356 = vmatpush2.xpose.msra.mxu0 0.0
  %357 = vmatprep.subr.mxu0 0.0
  %358 = vmatpush2.xpose.msra.mxu0 0.0
  %359 = vmatprep.mubr.f32.mxu0 %v289
  %360 = vmatmul.mubr.f32.gmra.mxu0 %v281
  %v361 = vpop.f32.mrf.mxu0
  %v362 = vadd.f32 0.0, %v361
  %v363 = vpop.f32.mrf.mxu0
  %364 = vdwg.mxu0
  %365 = vmatprep.subr.mxu0 %v272
  %366 = vmatpush1.xpose.msra.mxu0 %v271
  %367 = vmatprep.subr.mxu0 %v268
  %368 = vmatpush1.xpose.msra.mxu0 %v267
  %369 = vmatprep.subr.mxu0 %v264
  %370 = vmatpush1.xpose.msra.mxu0 %v263
  %371 = vmatprep.subr.mxu0 %v260
  %372 = vmatpush1.xpose.msra.mxu0 %v259
  %373 = vmatprep.subr.mxu0 %v256
  %374 = vmatpush1.xpose.msra.mxu0 %v255
  %375 = vmatprep.subr.mxu0 %v252
  %376 = vmatpush1.xpose.msra.mxu0 %v251
  %377 = vmatprep.subr.mxu0 %v248
  %378 = vmatpush1.xpose.msra.mxu0 %v247
  %379 = vmatprep.subr.mxu0 %v244
  %380 = vmatpush1.xpose.msra.mxu0 %v243
  %381 = vmatprep.subr.mxu0 %v240
  %382 = vmatpush1.xpose.msra.mxu0 %v239
  %383 = vmatprep.subr.mxu0 %v236
  %384 = vmatpush1.xpose.msra.mxu0 %v235
  %385 = vmatprep.subr.mxu0 %v232
  %386 = vmatpush1.xpose.msra.mxu0 %v231
  %387 = vmatprep.subr.mxu0 %v228
  %388 = vmatpush1.xpose.msra.mxu0 %v227
  %389 = vmatprep.subr.mxu0 %v224
  %390 = vmatpush1.xpose.msra.mxu0 %v223
  %391 = vmatprep.subr.mxu0 %v220
  %392 = vmatpush1.xpose.msra.mxu0 %v219
  %393 = vmatprep.subr.mxu0 %v216
  %394 = vmatpush1.xpose.msra.mxu0 %v215
  %395 = vmatprep.subr.mxu0 %v212
  %396 = vmatpush1.xpose.msra.mxu0 %v211
  %397 = vmatprep.subr.mxu0 0.0
  %398 = vmatpush2.xpose.msra.mxu0 0.0
  %399 = vmatprep.subr.mxu0 0.0
  %400 = vmatpush2.xpose.msra.mxu0 0.0
  %401 = vmatprep.subr.mxu0 0.0
  %402 = vmatpush2.xpose.msra.mxu0 0.0
  %403 = vmatprep.subr.mxu0 0.0
  %404 = vmatpush2.xpose.msra.mxu0 0.0
  %405 = vmatprep.subr.mxu0 0.0
  %406 = vmatpush2.xpose.msra.mxu0 0.0
  %407 = vmatprep.subr.mxu0 0.0
  %408 = vmatpush2.xpose.msra.mxu0 0.0
  %409 = vmatprep.subr.mxu0 0.0
  %410 = vmatpush2.xpose.msra.mxu0 0.0
  %411 = vmatprep.subr.mxu0 0.0
  %412 = vmatpush2.xpose.msra.mxu0 0.0
  %413 = vmatprep.subr.mxu0 0.0
  %414 = vmatpush2.xpose.msra.mxu0 0.0
  %415 = vmatprep.subr.mxu0 0.0
  %416 = vmatpush2.xpose.msra.mxu0 0.0
  %417 = vmatprep.subr.mxu0 0.0
  %418 = vmatpush2.xpose.msra.mxu0 0.0
  %419 = vmatprep.subr.mxu0 0.0
  %420 = vmatpush2.xpose.msra.mxu0 0.0
  %421 = vmatprep.subr.mxu0 0.0
  %422 = vmatpush2.xpose.msra.mxu0 0.0
  %423 = vmatprep.subr.mxu0 0.0
  %424 = vmatpush2.xpose.msra.mxu0 0.0
  %425 = vmatprep.subr.mxu0 0.0
  %426 = vmatpush2.xpose.msra.mxu0 0.0
  %427 = vmatprep.subr.mxu0 0.0
  %428 = vmatpush2.xpose.msra.mxu0 0.0
  %429 = vmatprep.mubr.f32.mxu0 %v290
  %430 = vmatmul.mubr.f32.gmra.mxu0 %v288
  %v431 = vpop.f32.mrf.mxu0
  %v432 = vadd.f32 %v362, %v431
  %v433 = vpop.f32.mrf.mxu0
  %434 = vdwg.mxu0
  %435 = vst [vmem:[%s2] sm:$0x3] %v432
  // Predicated region
  $region10: #{fn.1} parent=0 // pred_check
    _
  $region11: #{fn.1} parent=0 // pred_check_branch
    %437 = sbr.rel (0) target = $region13
  $region12: #{fn.1} parent=0 // pred_region
    _
  $region13: #{fn.1} parent=0 // pred_fallthru
    _
  // Predicated region
  $region14: #{fn.1} parent=0 // pred_check
    _
  $region15: #{fn.1} parent=0 // pred_check_branch
    %439 = sbr.rel (0) target = $region17
  $region16: #{fn.1} parent=0 // pred_region
    _
  $region17: #{fn.1} parent=0 // pred_fallthru
    _

</llo_original>
